<compile_context>
chip_gen: v7x
topology: tpu7x:2x2x1
jax: 0.10.0
libtpu: 0.0.40
codegen_flags: <defaults>
</compile_context>

<pallas_src>
import functools

import jax
import jax.numpy as jnp
from jax.experimental import pallas as pl
from jax.experimental.pallas import tpu as pltpu

_LANES = 128
# ~4 MiB per block: big enough to hit ~85%+ of HBM roofline, small enough that
# double-buffered in+out blocks stay well inside VMEM on v5e/v6e/v7x.
_TARGET_BLOCK_BYTES = 4 * 1024 * 1024
_VMEM_LIMIT_BYTES = 32 * 1024 * 1024


def _sublanes_for_dtype(dtype):
    # Packed min-tile sublane count: 8 for 4-byte, 16 for 2-byte, 32 for 1-byte.
    itemsize = jnp.dtype(dtype).itemsize
    return max(8, 32 // itemsize)


def _binarize_kernel(x_ref, o_ref, *, threshold):
    # Compare in f32 (matches PyTorch promotion for int / low-precision inputs),
    # then cast the 0/1 predicate back to the output dtype. One vcmp+vsel per
    # vreg -- compute is irrelevant, this kernel lives and dies by DMA.
    x = x_ref[...].astype(jnp.float32)
    o_ref[...] = (x > jnp.float32(threshold)).astype(o_ref.dtype)


def binarize(x, threshold=0.5):
    """Binarize `x`: 1 where x > threshold, else 0. Same shape & dtype as x."""
    orig_shape = x.shape
    orig_dtype = x.dtype
    itemsize = jnp.dtype(orig_dtype).itemsize
    sublanes = _sublanes_for_dtype(orig_dtype)

    flat = x.reshape(-1)  # free on contiguous layouts
    n = flat.shape[0]

    # Pad only when the flat length is not lane-aligned (otherwise zero extra
    # HBM passes in the wrapper).
    pad = (-n) % _LANES
    if pad:
        flat = jnp.pad(flat, (0, pad))
    rows = (n + pad) // _LANES
    x2d = flat.reshape(rows, _LANES)

    # Choose a large, sublane-aligned row block; the cdiv grid handles the
    # ragged trailing block, so `rows` needs no divisibility property.
    if rows <= sublanes:
        row_block = rows  # single block equal to the full (tiny) array
    else:
        row_block = min(_TARGET_BLOCK_BYTES // (_LANES * itemsize), rows)
        row_block = (row_block // sublanes) * sublanes

    num_steps = pl.cdiv(rows, row_block)
    # Prefer >=2 parallel grid steps so v7x's 2 TensorCores can both issue DMAs
    # on mid-sized inputs (large inputs naturally get many steps).
    if num_steps == 1 and rows >= 4 * sublanes:
        row_block = max(sublanes, (pl.cdiv(rows, 2) // sublanes) * sublanes)
        num_steps = pl.cdiv(rows, row_block)

    kernel = functools.partial(_binarize_kernel, threshold=float(threshold))

    # TODO(synk): input_output_aliases={0: 0} is a free peak-memory win when the
    # caller allows clobbering x, but is unsafe by default (x2d may alias x).
    out2d = pl.pallas_call(
        kernel,
        out_shape=jax.ShapeDtypeStruct((rows, _LANES), orig_dtype),
        grid_spec=pltpu.PrefetchScalarGridSpec(
            num_scalar_prefetch=0,
            grid=(num_steps,),
            in_specs=[pl.BlockSpec((row_block, _LANES), lambda i: (i, 0))],
            out_specs=pl.BlockSpec((row_block, _LANES), lambda i: (i, 0)),
        ),
        compiler_params=pltpu.CompilerParams(
            dimension_semantics=("parallel",),
            vmem_limit_bytes=_VMEM_LIMIT_BYTES,
        ),
        cost_estimate=pl.CostEstimate(
            flops=n, transcendentals=0, bytes_accessed=2 * n * itemsize),
    )(x2d)

    if pad:
        out = out2d.reshape(-1)[:n].reshape(orig_shape)
    else:
        out = out2d.reshape(orig_shape)
    return out


if __name__ == "__main__":
    key = jax.random.PRNGKey(0)

    # Case 1: small NCHW f32 input (lane-aligned path, no pad/slice copies).
    x = jax.random.uniform(key, (2, 4, 16, 16), dtype=jnp.float32)
    y = jax.block_until_ready(binarize(x, threshold=0.5))
    ref = (x > 0.5).astype(x.dtype)
    assert y.shape == x.shape and y.dtype == x.dtype
    assert bool(jnp.all(y == ref))

    # Case 2: odd-sized bf16 input (exercises the ragged pad/slice path and
    # the dtype-dependent sublane handling).
    x2 = jax.random.uniform(jax.random.PRNGKey(0), (3, 5, 7), dtype=jnp.bfloat16)
    y2 = jax.block_until_ready(binarize(x2, threshold=0.5))
    ref2 = (x2 > 0.5).astype(x2.dtype)
    assert y2.shape == x2.shape and y2.dtype == x2.dtype
    assert bool(jnp.all(y2 == ref2))

    print("KERNEL_OK")
</pallas_src>

<mosaic_0001>
module attributes {stable_mosaic.version = 11 : i64} {
  func.func @_binarize_kernel(%arg0: i32, %arg1: memref<16x128xf32, #tpu.memory_space<vmem>>, %arg2: memref<16x128xf32, #tpu.memory_space<vmem>>) attributes {dimension_semantics = [#tpu.dimension_semantics<parallel>], iteration_bounds = array<i64: 1>, scalar_prefetch = 0 : i64, scratch_operands = 0 : i64, tpu.core_type = #tpu.core_type<tc>, window_params = [{transform_indices = @transform_0, window_bounds = array<i64: 16, 128>}, {transform_indices = @transform_1, window_bounds = array<i64: 16, 128>}]} {
    %c0 = arith.constant 0 : index
    %c0_0 = arith.constant 0 : index
    %0 = vector.load %arg1[%c0, %c0_0] : memref<16x128xf32, #tpu.memory_space<vmem>>, vector<16x128xf32>
    %cst = arith.constant 5.000000e-01 : f32
    %1 = vector.broadcast %cst : f32 to vector<16x128xf32>
    %2 = arith.cmpf ogt, %0, %1 : vector<16x128xf32>
    %3 = arith.extui %2 : vector<16x128xi1> to vector<16x128xi32>
    %4 = arith.sitofp %3 : vector<16x128xi32> to vector<16x128xf32>
    %c0_1 = arith.constant 0 : index
    %c0_2 = arith.constant 0 : index
    %5 = vector.load %arg2[%c0_1, %c0_2] : memref<16x128xf32, #tpu.memory_space<vmem>>, vector<16x128xf32>
    tpu.vector_store %arg2[%c0_1, %c0_2], %4 {strides = array<i32>} : memref<16x128xf32, #tpu.memory_space<vmem>>, vector<16x128xf32>,
    return
  }
  func.func @transform_0(%arg0: i32) -> (i32, i32) {
    %c0_i32 = arith.constant 0 : i32
    %c0_i32_0 = arith.constant 0 : i32
    return %arg0, %c0_i32 : i32, i32
  }
  func.func @transform_1(%arg0: i32) -> (i32, i32) {
    %c0_i32 = arith.constant 0 : i32
    %c0_i32_0 = arith.constant 0 : i32
    return %arg0, %c0_i32 : i32, i32
  }
}

</mosaic_0001>

<llo_original>
// kernel: tpu_custom_call.1
$region0: #{tpu_custom_call.1}
  #allocation0 [shape = 'u32[]', space=smem, size = 0x4, offset = 0x4, fixed_abs, tag = 'smem constant byte address 0x4 - core index']
  #allocation1 [shape = 'u32[144,128]{1,0:T(1,128)}', space=vmem, size = 0x12000, scoped, tag = 'internal scratch']
  %s0 = inlined_call_operand.hbm [shape: f32[16,128], index: 0, kind: input, shape index: {}]
  %s1 = inlined_call_operand.hbm [shape: f32[16,128], index: 1, kind: output, shape index: {}]
  %s2 = sld [smem:[#allocation0]]
  $region18: #{tpu_custom_call.1} parent=0
    _
  %s4 = ssub.s32 1, %s2
  %s5 = scalar_select 0, %s4, %s2
  $region1: #{tpu_custom_call.1} parent=0
    #allocation2 [shape = 'u8[8192]{0}', space=vmem, size = 0x2000, scoped, tag = 'input window, operand 0, single buffered']
    #allocation3 [shape = 's32[1]{0}', space=sflag, size = 0x4, scoped, tag = 'scoped memory for tpu_custom_call.1']
    #allocation4 [shape = 's32[1]{0}', space=sflag, size = 0x4, scoped, tag = 'scoped memory for tpu_custom_call.1']
    #allocation5 [shape = 'u8[8192]{0}', space=vmem, size = 0x2000, scoped, tag = 'output window, operand 0, single buffered']
    %6 = vsyncpa [#allocation3], 0
    %7 = vsyncpa [#allocation4], 0
    // Predicated region
    $region2: #{tpu_custom_call.1} parent=1 // pred_check
      _
    $region3: #{tpu_custom_call.1} parent=1 // pred_check_branch
      %9 = sbr.rel (0) target = $region5
    $region4: #{tpu_custom_call.1} parent=1 // pred_region
      %s11 = ssub.s32 256, 256
      %12 = vsyncadd [#allocation3], %s11
      %s13 = sshll.u32 [#allocation2], 4
      %s14 = int_to_ptr.vmem [resolvable:$true] %s13
      %19 = dma.hbm_to_vmem [thread:$0]  %s0, 256, %s14, [#allocation3], 128, 128, 8
    $region5: #{tpu_custom_call.1} parent=1 // pred_fallthru
      _
    // Predicated region
    $region6: #{tpu_custom_call.1} parent=1 // pred_check
      _
    $region7: #{tpu_custom_call.1} parent=1 // pred_check_branch
      %21 = sbr.rel (0) target = $region9
    $region8: #{tpu_custom_call.1} parent=1 // pred_region
      %22 = dma.done [#allocation3], 256
    $region9: #{tpu_custom_call.1} parent=1 // pred_fallthru
      _
    %v23 = vld [vmem:[#allocation2] sm:$0xff]
    %v24 = vld [vmem:[#allocation2 + $0x8] sm:$0xff]
    %vm25 = vcmp.gt.f32.partialorder %v23, 0.5
    %vm26 = vcmp.gt.f32.partialorder %v24, 0.5
    %v27 = vsel %vm25, 1, 0
    %v28 = vsel %vm26, 1, 0
    %v29 = vcvt.s32.f32 %v27
    %v30 = vcvt.s32.f32 %v28
    %31 = vst [vmem:[#allocation5] sm:$0xff] %v29
    %32 = vst [vmem:[#allocation5 + $0x8] sm:$0xff] %v30
    // Predicated region
    $region10: #{tpu_custom_call.1} parent=1 // pred_check
      _
    $region11: #{tpu_custom_call.1} parent=1 // pred_check_branch
      %34 = sbr.rel (0) target = $region13
    $region12: #{tpu_custom_call.1} parent=1 // pred_region
      %s36 = ssub.s32 256, 256
      %37 = vsyncadd [#allocation4], %s36
      %s38 = sshll.u32 [#allocation5], 4
      %s39 = int_to_ptr.vmem [resolvable:$true] %s38
      %44 = dma.vmem_to_hbm [thread:$0]  %s39, 256, %s1, [#allocation4], 128, 128, 8
    $region13: #{tpu_custom_call.1} parent=1 // pred_fallthru
      _
    // Predicated region
    $region14: #{tpu_custom_call.1} parent=1 // pred_check
      _
    $region15: #{tpu_custom_call.1} parent=1 // pred_check_branch
      %46 = sbr.rel (0) target = $region17
    $region16: #{tpu_custom_call.1} parent=1 // pred_region
      %47 = dma.done [#allocation4], 256
    $region17: #{tpu_custom_call.1} parent=1 // pred_fallthru
      _
    %48 = vsyncpa [#allocation3], 1
    %49 = vsyncpa [#allocation4], 1

</llo_original>
